<compile_context>
chip_gen: v7x
topology: tpu7x:2x2x1
jax: 0.10.0
libtpu: 0.0.40
codegen_flags: <defaults>
</compile_context>

<pallas_src>
import jax
import jax.numpy as jnp
import numpy as np
from jax.experimental import pallas as pl
from jax.experimental.pallas import tpu as pltpu

ENCODED_SPACE_DIM = 8          # args.latent (small, synthetic)
FEATURE_DIM = 128              # x = np.arange(128) / 128  -> feature size 128
HIDDEN_DIM = 2 * ENCODED_SPACE_DIM   # 16

# ---- packed-parameter layout (all rows sublane-8 aligned) -------------------
# Buffer A: (160, 16)  rows  [0,128) = w1t, [128,144) = w23t, 144 = b1, 152 = b23
# Buffer B: ( 24, 128) rows  [0, 16) = w4t, 16 = b4
_W1T_LO, _W1T_HI = 0, FEATURE_DIM                             # [0, 128)
_W23T_LO, _W23T_HI = FEATURE_DIM, FEATURE_DIM + HIDDEN_DIM    # [128, 144)
_B1_ROW = _W23T_HI                                            # 144
_B23_ROW = _W23T_HI + 8                                       # 152
_A_ROWS = _B23_ROW + 8                                        # 160
_W4T_LO, _W4T_HI = 0, HIDDEN_DIM                              # [0, 16)
_B4_ROW = HIDDEN_DIM                                          # 16
_B_ROWS = _B4_ROW + 8                                         # 24

# Split a single tile across two TensorCores once a batch is at least this big.
_MIN_ROWS_FOR_CORE_SPLIT = 1024


def _autoencoder_kernel(x_ref, pa_ref, pb_ref, dec_ref):
    # Partial (ragged last) tiles: any garbage rows are row-independent through
    # the whole network and their output rows are dropped by the masked store.
    x = x_ref[...].astype(jnp.float32)                  # (TB, 128)

    w1t = pa_ref[_W1T_LO:_W1T_HI, :]                    # (128, 16)
    w23t = pa_ref[_W23T_LO:_W23T_HI, :]                 # (16, 16)
    b1 = pa_ref[_B1_ROW:_B1_ROW + 1, :]                 # (1, 16)
    b23 = pa_ref[_B23_ROW:_B23_ROW + 1, :]              # (1, 16)
    w4t = pb_ref[_W4T_LO:_W4T_HI, :]                    # (16, 128)
    b4 = pb_ref[_B4_ROW:_B4_ROW + 1, :]                 # (1, 128)

    # Encoder fc1 + tanh
    h1 = jnp.tanh(jnp.dot(x, w1t, preferred_element_type=jnp.float32) + b1)
    # Folded (encoder fc2  ∘  decoder fc1) + tanh
    h2 = jnp.tanh(jnp.dot(h1, w23t, preferred_element_type=jnp.float32) + b23)
    # Decoder fc2
    dec = jnp.dot(h2, w4t, preferred_element_type=jnp.float32) + b4

    dec_ref[...] = dec.astype(dec_ref.dtype)


def prepare_params(params):
    """One-time preprocessing: transpose, fold, and pack weights for the kernel."""
    w1, b1, w2, b2, w3, b3, w4, b4 = params

    w1t = w1.T                        # (128, 16)
    w23t = w2.T @ w3.T                # (16, 16)   folds enc-fc2 into dec-fc1
    b23 = b2 @ w3.T + b3              # (16,)
    w4t = w4.T                        # (16, 128)

    pa = jnp.zeros((_A_ROWS, HIDDEN_DIM), jnp.float32)
    pa = pa.at[_W1T_LO:_W1T_HI].set(w1t)
    pa = pa.at[_W23T_LO:_W23T_HI].set(w23t)
    pa = pa.at[_B1_ROW].set(b1)
    pa = pa.at[_B23_ROW].set(b23)

    pb = jnp.zeros((_B_ROWS, FEATURE_DIM), jnp.float32)
    pb = pb.at[_W4T_LO:_W4T_HI].set(w4t)
    pb = pb.at[_B4_ROW].set(b4)

    return jax.device_put(pa), jax.device_put(pb)


def _cdiv(a, b):
    return -(-a // b)


def _round_up(n, m):
    return _cdiv(n, m) * m


def _choose_tiling(B, tb):
    """Equalized batch tiling: (tile_rows, num_tiles)."""
    tb = max(8, _round_up(tb, 8))
    n_tiles = _cdiv(B, tb)
    # Large single-tile batches: force >=2 steps so the parallel batch axis
    # can shard across both TensorCores (v7x megacore; harmless elsewhere).
    if n_tiles == 1 and B >= _MIN_ROWS_FOR_CORE_SPLIT:
        n_tiles = 2
    if n_tiles == 1:
        # Whole-array block: legal for any B (block == full array dims), no padding.
        return B, 1
    TB = _round_up(_cdiv(B, n_tiles), 8)
    n_tiles = _cdiv(B, TB)           # rounding may have reduced the tile count
    return TB, n_tiles


def autoencoder_forward(x, packed_params, *, tb=2048):
    """x: (B, 1, 128) -> decoded (B, 1, 128), same dtype as x (method='ae')."""
    pa, pb = packed_params
    B = x.shape[0]
    x2d = x.reshape(B, FEATURE_DIM)

    TB, n_tiles = _choose_tiling(B, tb)

    # Only raise the scoped-VMEM limit if an unusually large tb demands it.
    itemsize = jnp.dtype(x2d.dtype).itemsize
    needed_vmem = 4 * TB * FEATURE_DIM * itemsize + (1 << 20)  # in+out, 2x buffered
    cp_kwargs = dict(dimension_semantics=("parallel",))
    if needed_vmem > 24 * (1 << 20):
        cp_kwargs["vmem_limit_bytes"] = int(needed_vmem + (4 << 20))

    dec = pl.pallas_call(
        _autoencoder_kernel,
        out_shape=jax.ShapeDtypeStruct((B, FEATURE_DIM), x2d.dtype),
        grid=(n_tiles,),
        in_specs=[
            pl.BlockSpec((TB, FEATURE_DIM), lambda i: (i, 0)),       # x tile
            pl.BlockSpec((_A_ROWS, HIDDEN_DIM), lambda i: (0, 0)),   # packed A (resident)
            pl.BlockSpec((_B_ROWS, FEATURE_DIM), lambda i: (0, 0)),  # packed B (resident)
        ],
        out_specs=pl.BlockSpec((TB, FEATURE_DIM), lambda i: (i, 0)),
        compiler_params=pltpu.CompilerParams(**cp_kwargs),
    )(x2d, pa, pb)

    return dec.reshape(B, 1, FEATURE_DIM)


def init_params(key):
    """Deterministic PyTorch-style (uniform +/- 1/sqrt(fan_in)) init."""
    def linear(key, out_f, in_f):
        kw, kb = jax.random.split(key)
        bound = 1.0 / np.sqrt(in_f)
        w = jax.random.uniform(kw, (out_f, in_f), jnp.float32, -bound, bound)
        b = jax.random.uniform(kb, (out_f,), jnp.float32, -bound, bound)
        return w, b

    k1, k2, k3, k4 = jax.random.split(key, 4)
    w1, b1 = linear(k1, HIDDEN_DIM, FEATURE_DIM)          # enc fc1: 128 -> 2L
    w2, b2 = linear(k2, ENCODED_SPACE_DIM, HIDDEN_DIM)    # enc fc2: 2L  -> L
    w3, b3 = linear(k3, HIDDEN_DIM, ENCODED_SPACE_DIM)    # dec fc1: L   -> 2L
    w4, b4 = linear(k4, FEATURE_DIM, HIDDEN_DIM)          # dec fc2: 2L  -> 128
    return (w1, b1, w2, b2, w3, b3, w4, b4)


def _reference(x, params):
    """Unfolded pure-JAX reference matching the PyTorch module exactly."""
    w1, b1, w2, b2, w3, b3, w4, b4 = params
    x2d = x.reshape(x.shape[0], FEATURE_DIM).astype(jnp.float32)
    h1 = jnp.tanh(x2d @ w1.T + b1)
    enc = h1 @ w2.T + b2
    h2 = jnp.tanh(enc @ w3.T + b3)
    dec = h2 @ w4.T + b4
    return dec.reshape(x.shape[0], 1, FEATURE_DIM)


if __name__ == "__main__":
    key = jax.random.PRNGKey(0)
    kx, kx2, kp = jax.random.split(key, 3)

    params = init_params(kp)
    packed = prepare_params(params)

    # Small aligned batch: single whole-array block, grid=(1,).
    B = 8
    x = jax.random.normal(kx, (B, 1, FEATURE_DIM), jnp.float32)
    decoded = jax.block_until_ready(autoencoder_forward(x, packed))
    ref = _reference(x, params)
    assert decoded.shape == (B, 1, FEATURE_DIM)
    np.testing.assert_allclose(np.asarray(decoded), np.asarray(ref),
                               rtol=1e-5, atol=1e-5)

    # Non-multiple-of-8 batch, small tb -> multi-step grid with a partial
    # last tile (exercises the no-pad / masked-writeback path).
    B2 = 13
    x2 = jax.random.normal(kx2, (B2, 1, FEATURE_DIM), jnp.float32)
    decoded2 = jax.block_until_ready(autoencoder_forward(x2, packed, tb=8))
    ref2 = _reference(x2, params)
    assert decoded2.shape == (B2, 1, FEATURE_DIM)
    np.testing.assert_allclose(np.asarray(decoded2), np.asarray(ref2),
                               rtol=1e-5, atol=1e-5)

    print("KERNEL_OK")
</pallas_src>

<mosaic_0001>
module attributes {stable_mosaic.version = 11 : i64} {
  func.func @_autoencoder_kernel(%arg0: i32, %arg1: memref<8x128xf32, #tpu.memory_space<vmem>>, %arg2: memref<160x16xf32, #tpu.memory_space<vmem>>, %arg3: memref<24x128xf32, #tpu.memory_space<vmem>>, %arg4: memref<8x128xf32, #tpu.memory_space<vmem>>) attributes {dimension_semantics = [#tpu.dimension_semantics<parallel>], iteration_bounds = array<i64: 1>, scalar_prefetch = 0 : i64, scratch_operands = 0 : i64, tpu.core_type = #tpu.core_type<tc>, window_params = [{transform_indices = @transform_0, window_bounds = array<i64: 8, 128>}, {pipeline_mode = #tpu.pipeline_mode<synchronous>, transform_indices = @transform_1, window_bounds = array<i64: 160, 16>}, {pipeline_mode = #tpu.pipeline_mode<synchronous>, transform_indices = @transform_2, window_bounds = array<i64: 24, 128>}, {transform_indices = @transform_3, window_bounds = array<i64: 8, 128>}]} {
    %c0 = arith.constant 0 : index
    %c0_0 = arith.constant 0 : index
    %0 = vector.load %arg1[%c0, %c0_0] : memref<8x128xf32, #tpu.memory_space<vmem>>, vector<8x128xf32>
    %c0_1 = arith.constant 0 : index
    %c0_2 = arith.constant 0 : index
    %1 = vector.load %arg2[%c0_1, %c0_2] : memref<160x16xf32, #tpu.memory_space<vmem>>, vector<128x16xf32>
    %c128 = arith.constant 128 : index
    %c0_3 = arith.constant 0 : index
    %2 = vector.load %arg2[%c128, %c0_3] : memref<160x16xf32, #tpu.memory_space<vmem>>, vector<16x16xf32>
    %c144 = arith.constant 144 : index
    %c0_4 = arith.constant 0 : index
    %3 = vector.load %arg2[%c144, %c0_4] : memref<160x16xf32, #tpu.memory_space<vmem>>, vector<1x16xf32>
    %c152 = arith.constant 152 : index
    %c0_5 = arith.constant 0 : index
    %4 = vector.load %arg2[%c152, %c0_5] : memref<160x16xf32, #tpu.memory_space<vmem>>, vector<1x16xf32>
    %c0_6 = arith.constant 0 : index
    %c0_7 = arith.constant 0 : index
    %5 = vector.load %arg3[%c0_6, %c0_7] : memref<24x128xf32, #tpu.memory_space<vmem>>, vector<16x128xf32>
    %c16 = arith.constant 16 : index
    %c0_8 = arith.constant 0 : index
    %6 = vector.load %arg3[%c16, %c0_8] : memref<24x128xf32, #tpu.memory_space<vmem>>, vector<1x128xf32>
    %cst = arith.constant dense<0.000000e+00> : vector<8x16xf32>
    %7 = tpu.matmul %0, %1, %cst {dimension_numbers = #tpu.dot_dimension_numbers<[1], [0], [0], [1], [0, 0, 1, 1], [], []>} : vector<8x128xf32>, vector<128x16xf32>, vector<8x16xf32> -> vector<8x16xf32>
    %8 = vector.broadcast %3 : vector<1x16xf32> to vector<8x16xf32>
    %9 = arith.addf %7, %8 : vector<8x16xf32>
    %10 = math.tanh %9 : vector<8x16xf32>
    %cst_9 = arith.constant dense<0.000000e+00> : vector<8x16xf32>
    %11 = tpu.matmul %10, %2, %cst_9 {dimension_numbers = #tpu.dot_dimension_numbers<[1], [0], [0], [1], [0, 0, 1, 1], [], []>} : vector<8x16xf32>, vector<16x16xf32>, vector<8x16xf32> -> vector<8x16xf32>
    %12 = vector.broadcast %4 : vector<1x16xf32> to vector<8x16xf32>
    %13 = arith.addf %11, %12 : vector<8x16xf32>
    %14 = math.tanh %13 : vector<8x16xf32>
    %cst_10 = arith.constant dense<0.000000e+00> : vector<8x128xf32>
    %15 = tpu.matmul %14, %5, %cst_10 {dimension_numbers = #tpu.dot_dimension_numbers<[1], [0], [0], [1], [0, 0, 1, 1], [], []>} : vector<8x16xf32>, vector<16x128xf32>, vector<8x128xf32> -> vector<8x128xf32>
    %16 = vector.broadcast %6 : vector<1x128xf32> to vector<8x128xf32>
    %17 = arith.addf %15, %16 : vector<8x128xf32>
    %c0_11 = arith.constant 0 : index
    %c0_12 = arith.constant 0 : index
    %18 = vector.load %arg4[%c0_11, %c0_12] : memref<8x128xf32, #tpu.memory_space<vmem>>, vector<8x128xf32>
    tpu.vector_store %arg4[%c0_11, %c0_12], %17 {strides = array<i32>} : memref<8x128xf32, #tpu.memory_space<vmem>>, vector<8x128xf32>,
    return
  }
  func.func @transform_0(%arg0: i32) -> (i32, i32) {
    %c0_i32 = arith.constant 0 : i32
    %c0_i32_0 = arith.constant 0 : i32
    return %arg0, %c0_i32 : i32, i32
  }
  func.func @transform_1(%arg0: i32) -> (i32, i32) {
    %c0_i32 = arith.constant 0 : i32
    %c0_i32_0 = arith.constant 0 : i32
    %c0_i32_1 = arith.constant 0 : i32
    return %c0_i32, %c0_i32_0 : i32, i32
  }
  func.func @transform_2(%arg0: i32) -> (i32, i32) {
    %c0_i32 = arith.constant 0 : i32
    %c0_i32_0 = arith.constant 0 : i32
    %c0_i32_1 = arith.constant 0 : i32
    return %c0_i32, %c0_i32_0 : i32, i32
  }
  func.func @transform_3(%arg0: i32) -> (i32, i32) {
    %c0_i32 = arith.constant 0 : i32
    %c0_i32_0 = arith.constant 0 : i32
    return %arg0, %c0_i32 : i32, i32
  }
}

</mosaic_0001>

<llo_original>
// kernel: tpu_custom_call.1
$region0: #{tpu_custom_call.1}
  #allocation0 [shape = 'u32[]', space=smem, size = 0x4, offset = 0x4, fixed_abs, tag = 'smem constant byte address 0x4 - core index']
  #allocation1 [shape = 'u32[144,128]{1,0:T(1,128)}', space=vmem, size = 0x12000, scoped, tag = 'internal scratch']
  %s0 = inlined_call_operand.vmem [shape: f32[8,128], index: 0, kind: input, shape index: {}]
  %s1 = inlined_call_operand.vmem [shape: f32[160,16], index: 1, kind: input, shape index: {}]
  %s2 = inlined_call_operand.vmem [shape: f32[24,128], index: 2, kind: input, shape index: {}]
  %s3 = inlined_call_operand.hbm [shape: f32[8,128], index: 3, kind: output, shape index: {}]
  %s4 = sld [smem:[#allocation0]]
  $region22: #{tpu_custom_call.1} parent=0
    _
  %s6 = ssub.s32 1, %s4
  %s7 = scalar_select 0, %s6, %s4
  $region1: #{tpu_custom_call.1} parent=0
    #allocation2 [shape = 'u8[4096]{0}', space=vmem, size = 0x1000, scoped, tag = 'output window, operand 0, single buffered']
    #allocation3 [shape = 's32[1]{0}', space=sflag, size = 0x4, scoped, tag = 'scoped memory for tpu_custom_call.1']
    %8 = vsyncpa [#allocation3], 0
    // Predicated region
    $region2: #{tpu_custom_call.1} parent=1 // pred_check
      _
    $region3: #{tpu_custom_call.1} parent=1 // pred_check_branch
      %10 = sbr.rel (0) target = $region5
    $region4: #{tpu_custom_call.1} parent=1 // pred_region
      _
    $region5: #{tpu_custom_call.1} parent=1 // pred_fallthru
      _
    // Predicated region
    $region6: #{tpu_custom_call.1} parent=1 // pred_check
      _
    $region7: #{tpu_custom_call.1} parent=1 // pred_check_branch
      %12 = sbr.rel (0) target = $region9
    $region8: #{tpu_custom_call.1} parent=1 // pred_region
      _
    $region9: #{tpu_custom_call.1} parent=1 // pred_fallthru
      _
    // Predicated region
    $region10: #{tpu_custom_call.1} parent=1 // pred_check
      _
    $region11: #{tpu_custom_call.1} parent=1 // pred_check_branch
      %14 = sbr.rel (0) target = $region13
    $region12: #{tpu_custom_call.1} parent=1 // pred_region
      _
    $region13: #{tpu_custom_call.1} parent=1 // pred_fallthru
      _
    %v15 = vld [vmem:[%s0] sm:$0xff]
    %v16 = vld [vmem:[%s1] sm:$0xff]
    %v17 = vld [vmem:[%s1 + $0x8] sm:$0xff]
    %v18 = vld [vmem:[%s1 + $0x10] sm:$0xff]
    %v19 = vld [vmem:[%s1 + $0x18] sm:$0xff]
    %v20 = vld [vmem:[%s1 + $0x20] sm:$0xff]
    %v21 = vld [vmem:[%s1 + $0x28] sm:$0xff]
    %v22 = vld [vmem:[%s1 + $0x30] sm:$0xff]
    %v23 = vld [vmem:[%s1 + $0x38] sm:$0xff]
    %v24 = vld [vmem:[%s1 + $0x40] sm:$0xff]
    %v25 = vld [vmem:[%s1 + $0x48] sm:$0xff]
    %v26 = vld [vmem:[%s1 + $0x50] sm:$0xff]
    %v27 = vld [vmem:[%s1 + $0x58] sm:$0xff]
    %v28 = vld [vmem:[%s1 + $0x60] sm:$0xff]
    %v29 = vld [vmem:[%s1 + $0x68] sm:$0xff]
    %v30 = vld [vmem:[%s1 + $0x70] sm:$0xff]
    %v31 = vld [vmem:[%s1 + $0x78] sm:$0xff]
    %v32 = vld [vmem:[%s1 + $0x80] sm:$0xff]
    %v33 = vld [vmem:[%s1 + $0x88] sm:$0xff]
    %v34 = vld [vmem:[%s1 + $0x90] sm:$0x1]
    %v35 = vld [vmem:[%s1 + $0x98] sm:$0x1]
    %v36 = vld [vmem:[%s2] sm:$0xff]
    %v37 = vld [vmem:[%s2 + $0x8] sm:$0xff]
    %v38 = vld [vmem:[%s2 + $0x10] sm:$0x1]
    %v39 = vlaneseq
    %v40 = vshrl.u32 %v39, 7
    %v41 = vsub.s32 0, %v40
    %v42 = vrot.slane %v34, %v41
    %43 = vmatprep.subr.mxu0 0.0
    %44 = vmatpush1.msra.mxu0 %v16
    %45 = vmatprep.subr.mxu0 0.0
    %46 = vmatpush1.msra.mxu0 %v17
    %47 = vmatprep.subr.mxu0 0.0
    %48 = vmatpush1.msra.mxu0 %v18
    %49 = vmatprep.subr.mxu0 0.0
    %50 = vmatpush1.msra.mxu0 %v19
    %51 = vmatprep.subr.mxu0 0.0
    %52 = vmatpush1.msra.mxu0 %v20
    %53 = vmatprep.subr.mxu0 0.0
    %54 = vmatpush1.msra.mxu0 %v21
    %55 = vmatprep.subr.mxu0 0.0
    %56 = vmatpush1.msra.mxu0 %v22
    %57 = vmatprep.subr.mxu0 0.0
    %58 = vmatpush1.msra.mxu0 %v23
    %59 = vmatprep.subr.mxu0 0.0
    %60 = vmatpush1.msra.mxu0 %v24
    %61 = vmatprep.subr.mxu0 0.0
    %62 = vmatpush1.msra.mxu0 %v25
    %63 = vmatprep.subr.mxu0 0.0
    %64 = vmatpush1.msra.mxu0 %v26
    %65 = vmatprep.subr.mxu0 0.0
    %66 = vmatpush1.msra.mxu0 %v27
    %67 = vmatprep.subr.mxu0 0.0
    %68 = vmatpush1.msra.mxu0 %v28
    %69 = vmatprep.subr.mxu0 0.0
    %70 = vmatpush1.msra.mxu0 %v29
    %71 = vmatprep.subr.mxu0 0.0
    %72 = vmatpush1.msra.mxu0 %v30
    %73 = vmatprep.subr.mxu0 0.0
    %74 = vmatpush1.msra.mxu0 %v31
    %75 = vmatprep.subr.mxu0 0.0
    %76 = vmatpush1.msra.mxu0 0.0
    %77 = vmatprep.subr.mxu0 0.0
    %78 = vmatpush1.msra.mxu0 0.0
    %79 = vmatprep.subr.mxu0 0.0
    %80 = vmatpush1.msra.mxu0 0.0
    %81 = vmatprep.subr.mxu0 0.0
    %82 = vmatpush1.msra.mxu0 0.0
    %83 = vmatprep.subr.mxu0 0.0
    %84 = vmatpush1.msra.mxu0 0.0
    %85 = vmatprep.subr.mxu0 0.0
    %86 = vmatpush1.msra.mxu0 0.0
    %87 = vmatprep.subr.mxu0 0.0
    %88 = vmatpush1.msra.mxu0 0.0
    %89 = vmatprep.subr.mxu0 0.0
    %90 = vmatpush1.msra.mxu0 0.0
    %91 = vmatprep.subr.mxu0 0.0
    %92 = vmatpush1.msra.mxu0 0.0
    %93 = vmatprep.subr.mxu0 0.0
    %94 = vmatpush1.msra.mxu0 0.0
    %95 = vmatprep.subr.mxu0 0.0
    %96 = vmatpush1.msra.mxu0 0.0
    %97 = vmatprep.subr.mxu0 0.0
    %98 = vmatpush1.msra.mxu0 0.0
    %99 = vmatprep.subr.mxu0 0.0
    %100 = vmatpush1.msra.mxu0 0.0
    %101 = vmatprep.subr.mxu0 0.0
    %102 = vmatpush1.msra.mxu0 0.0
    %103 = vmatprep.subr.mxu0 0.0
    %104 = vmatpush1.msra.mxu0 0.0
    %105 = vmatprep.subr.mxu0 0.0
    %106 = vmatpush1.msra.mxu0 0.0
    %107 = vmatprep.mubr.f32.mxu0 0.0
    %108 = vmatmul.mubr.f32.gmra.mrb[0].mxu0 %v15
    %v109 = vpop.f32.mrb[0].mxu0
    %v110 = vadd.f32 %v42, %v109
    %v111 = vpop.f32.mrb[0].mxu0
    %112 = vdwg.mxu0
    %v113 = vtanh.pop %v110
    %v114 = vlaneseq
    %v115 = vshrl.u32 %v114, 7
    %v116 = vsub.s32 0, %v115
    %v117 = vrot.slane %v35, %v116
    %vm118 = vcmask 130048
    %v120 = vsel %vm118, %v113, 0
    %122 = vmatprep.subr.mxu0 0.0
    %123 = vmatpush1.msra.mxu0 %v32
    %124 = vmatprep.subr.mxu0 0.0
    %125 = vmatpush1.msra.mxu0 %v33
    %126 = vmatprep.subr.mxu0 0.0
    %127 = vmatpush1.msra.mxu0 0.0
    %128 = vmatprep.subr.mxu0 0.0
    %129 = vmatpush1.msra.mxu0 0.0
    %130 = vmatprep.subr.mxu0 0.0
    %131 = vmatpush1.msra.mxu0 0.0
    %132 = vmatprep.subr.mxu0 0.0
    %133 = vmatpush1.msra.mxu0 0.0
    %134 = vmatprep.subr.mxu0 0.0
    %135 = vmatpush1.msra.mxu0 0.0
    %136 = vmatprep.subr.mxu0 0.0
    %137 = vmatpush1.msra.mxu0 0.0
    %138 = vmatprep.subr.mxu0 0.0
    %139 = vmatpush1.msra.mxu0 0.0
    %140 = vmatprep.subr.mxu0 0.0
    %141 = vmatpush1.msra.mxu0 0.0
    %142 = vmatprep.subr.mxu0 0.0
    %143 = vmatpush1.msra.mxu0 0.0
    %144 = vmatprep.subr.mxu0 0.0
    %145 = vmatpush1.msra.mxu0 0.0
    %146 = vmatprep.subr.mxu0 0.0
    %147 = vmatpush1.msra.mxu0 0.0
    %148 = vmatprep.subr.mxu0 0.0
    %149 = vmatpush1.msra.mxu0 0.0
    %150 = vmatprep.subr.mxu0 0.0
    %151 = vmatpush1.msra.mxu0 0.0
    %152 = vmatprep.subr.mxu0 0.0
    %153 = vmatpush1.msra.mxu0 0.0
    %154 = vmatprep.subr.mxu0 0.0
    %155 = vmatpush1.msra.mxu0 0.0
    %156 = vmatprep.subr.mxu0 0.0
    %157 = vmatpush1.msra.mxu0 0.0
    %158 = vmatprep.subr.mxu0 0.0
    %159 = vmatpush1.msra.mxu0 0.0
    %160 = vmatprep.subr.mxu0 0.0
    %161 = vmatpush1.msra.mxu0 0.0
    %162 = vmatprep.subr.mxu0 0.0
    %163 = vmatpush1.msra.mxu0 0.0
    %164 = vmatprep.subr.mxu0 0.0
    %165 = vmatpush1.msra.mxu0 0.0
    %166 = vmatprep.subr.mxu0 0.0
    %167 = vmatpush1.msra.mxu0 0.0
    %168 = vmatprep.subr.mxu0 0.0
    %169 = vmatpush1.msra.mxu0 0.0
    %170 = vmatprep.subr.mxu0 0.0
    %171 = vmatpush1.msra.mxu0 0.0
    %172 = vmatprep.subr.mxu0 0.0
    %173 = vmatpush1.msra.mxu0 0.0
    %174 = vmatprep.subr.mxu0 0.0
    %175 = vmatpush1.msra.mxu0 0.0
    %176 = vmatprep.subr.mxu0 0.0
    %177 = vmatpush1.msra.mxu0 0.0
    %178 = vmatprep.subr.mxu0 0.0
    %179 = vmatpush1.msra.mxu0 0.0
    %180 = vmatprep.subr.mxu0 0.0
    %181 = vmatpush1.msra.mxu0 0.0
    %182 = vmatprep.subr.mxu0 0.0
    %183 = vmatpush1.msra.mxu0 0.0
    %184 = vmatprep.subr.mxu0 0.0
    %185 = vmatpush1.msra.mxu0 0.0
    %186 = vmatprep.mubr.f32.mxu0 0.0
    %187 = vmatmul.mubr.f32.gmra.mrb[0].mxu0 %v120
    %v188 = vpop.f32.mrb[0].mxu0
    %v189 = vadd.f32 %v117, %v188
    %v190 = vpop.f32.mrb[0].mxu0
    %191 = vdwg.mxu0
    %v192 = vtanh.pop %v189
    %v193 = vlaneseq
    %v194 = vshrl.u32 %v193, 7
    %v195 = vsub.s32 0, %v194
    %v196 = vrot.slane %v38, %v195
    %v198 = vsel %vm118, %v192, 0
    %200 = vmatprep.subr.mxu0 0.0
    %201 = vmatpush1.msra.mxu0 %v36
    %202 = vmatprep.subr.mxu0 0.0
    %203 = vmatpush1.msra.mxu0 %v37
    %204 = vmatprep.subr.mxu0 0.0
    %205 = vmatpush1.msra.mxu0 0.0
    %206 = vmatprep.subr.mxu0 0.0
    %207 = vmatpush1.msra.mxu0 0.0
    %208 = vmatprep.subr.mxu0 0.0
    %209 = vmatpush1.msra.mxu0 0.0
    %210 = vmatprep.subr.mxu0 0.0
    %211 = vmatpush1.msra.mxu0 0.0
    %212 = vmatprep.subr.mxu0 0.0
    %213 = vmatpush1.msra.mxu0 0.0
    %214 = vmatprep.subr.mxu0 0.0
    %215 = vmatpush1.msra.mxu0 0.0
    %216 = vmatprep.subr.mxu0 0.0
    %217 = vmatpush1.msra.mxu0 0.0
    %218 = vmatprep.subr.mxu0 0.0
    %219 = vmatpush1.msra.mxu0 0.0
    %220 = vmatprep.subr.mxu0 0.0
    %221 = vmatpush1.msra.mxu0 0.0
    %222 = vmatprep.subr.mxu0 0.0
    %223 = vmatpush1.msra.mxu0 0.0
    %224 = vmatprep.subr.mxu0 0.0
    %225 = vmatpush1.msra.mxu0 0.0
    %226 = vmatprep.subr.mxu0 0.0
    %227 = vmatpush1.msra.mxu0 0.0
    %228 = vmatprep.subr.mxu0 0.0
    %229 = vmatpush1.msra.mxu0 0.0
    %230 = vmatprep.subr.mxu0 0.0
    %231 = vmatpush1.msra.mxu0 0.0
    %232 = vmatprep.subr.mxu0 0.0
    %233 = vmatpush1.msra.mxu0 0.0
    %234 = vmatprep.subr.mxu0 0.0
    %235 = vmatpush1.msra.mxu0 0.0
    %236 = vmatprep.subr.mxu0 0.0
    %237 = vmatpush1.msra.mxu0 0.0
    %238 = vmatprep.subr.mxu0 0.0
    %239 = vmatpush1.msra.mxu0 0.0
    %240 = vmatprep.subr.mxu0 0.0
    %241 = vmatpush1.msra.mxu0 0.0
    %242 = vmatprep.subr.mxu0 0.0
    %243 = vmatpush1.msra.mxu0 0.0
    %244 = vmatprep.subr.mxu0 0.0
    %245 = vmatpush1.msra.mxu0 0.0
    %246 = vmatprep.subr.mxu0 0.0
    %247 = vmatpush1.msra.mxu0 0.0
    %248 = vmatprep.subr.mxu0 0.0
    %249 = vmatpush1.msra.mxu0 0.0
    %250 = vmatprep.subr.mxu0 0.0
    %251 = vmatpush1.msra.mxu0 0.0
    %252 = vmatprep.subr.mxu0 0.0
    %253 = vmatpush1.msra.mxu0 0.0
    %254 = vmatprep.subr.mxu0 0.0
    %255 = vmatpush1.msra.mxu0 0.0
    %256 = vmatprep.subr.mxu0 0.0
    %257 = vmatpush1.msra.mxu0 0.0
    %258 = vmatprep.subr.mxu0 0.0
    %259 = vmatpush1.msra.mxu0 0.0
    %260 = vmatprep.subr.mxu0 0.0
    %261 = vmatpush1.msra.mxu0 0.0
    %262 = vmatprep.subr.mxu0 0.0
    %263 = vmatpush1.msra.mxu0 0.0
    %264 = vmatprep.mubr.f32.mxu0 0.0
    %265 = vmatmul.mubr.f32.gmra.mrb[0].mxu0 %v198
    %v266 = vpop.f32.mrb[0].mxu0
    %v267 = vadd.f32 %v196, %v266
    %v268 = vpop.f32.mrb[0].mxu0
    %269 = vdwg.mxu0
    %270 = vst [vmem:[#allocation2] sm:$0xff] %v267
    // Predicated region
    $region14: #{tpu_custom_call.1} parent=1 // pred_check
      _
    $region15: #{tpu_custom_call.1} parent=1 // pred_check_branch
      %272 = sbr.rel (0) target = $region17
    $region16: #{tpu_custom_call.1} parent=1 // pred_region
      %s274 = ssub.s32 128, 128
      %275 = vsyncadd [#allocation3], %s274
      %s277 = sshll.u32 [#allocation2], 4
      %s278 = int_to_ptr.vmem [resolvable:$true] %s277
      %280 = dma.vmem_to_hbm [thread:$0]  %s278, 128, %s3, [#allocation3]
    $region17: #{tpu_custom_call.1} parent=1 // pred_fallthru
      _
    // Predicated region
    $region18: #{tpu_custom_call.1} parent=1 // pred_check
      _
    $region19: #{tpu_custom_call.1} parent=1 // pred_check_branch
      %282 = sbr.rel (0) target = $region21
    $region20: #{tpu_custom_call.1} parent=1 // pred_region
      %283 = dma.done [#allocation3], 128
    $region21: #{tpu_custom_call.1} parent=1 // pred_fallthru
      _
    %284 = vsyncpa [#allocation3], 1

</llo_original>
